<compile_context>
chip_gen: v6e
topology: v6e:2x2x1
jax: 0.10.0
libtpu: 0.0.40
codegen_flags: <defaults>
</compile_context>

<pallas_src>
import functools

import jax
import jax.numpy as jnp
from jax.experimental import pallas as pl
from jax.experimental.pallas import tpu as pltpu


_TARGET_BLOCK_BYTES = 4 * 1024 * 1024  # sweet spot: big enough to amortize per-step overhead


def _sge_kernel(w_ref, b_ref, x_ref, o_ref, *, hw):
    # w_ref, b_ref: VMEM (GBT, 1, 1) f32 per-(batch, group) affine params
    # x_ref, o_ref: VMEM (GBT, cg, hw) tile in the caller dtype
    xg = x_ref[...].astype(jnp.float32)                      # (GBT, cg, HW)
    inv_hw = jnp.float32(1.0 / hw)

    # AdaptiveAvgPool2d(1): per-channel spatial mean (lane reduction).
    avg = jnp.sum(xg, axis=2, keepdims=True) * inv_hw        # (GBT, cg, 1)

    # xn = (x * avg_pool(x)).sum over group channels (sublane reduction).
    xn = jnp.sum(xg * avg, axis=1, keepdims=True)            # (GBT, 1, HW)

    # Center / scale over the spatial dim (torch .std -> unbiased, hw - 1).
    mu = jnp.sum(xn, axis=2, keepdims=True) * inv_hw         # (GBT, 1, 1)
    tc = xn - mu
    denom = float(max(hw - 1, 1))                            # guard degenerate 1x1
    var = jnp.sum(tc * tc, axis=2, keepdims=True) * jnp.float32(1.0 / denom)
    # Reference divides by std with NO epsilon; rsqrt keeps the divide off the VPU.
    t = tc * jax.lax.rsqrt(var)                              # (GBT, 1, HW)

    # Per-(batch, group) affine + sigmoid gate.
    t = t * w_ref[...] + b_ref[...]
    gate = jax.nn.sigmoid(t)                                 # (GBT, 1, HW)

    # Gate broadcasts over the cg sublane axis.
    o_ref[...] = (xg * gate).astype(o_ref.dtype)


def _largest_divisor_leq(n, cap):
    cap = max(1, min(n, cap))
    for d in range(cap, 0, -1):
        if n % d == 0:
            return d
    return 1


def spatial_group_enhance(x, weight, bias, groups):
    """x: (b, c, h, w); weight/bias: (1, groups, 1, 1). Returns (b, c, h, w)."""
    b, c, h, w = x.shape
    assert c % groups == 0
    cg = c // groups
    hw = h * w
    n = b * groups                               # fused (batch, group) axis
    itemsize = jnp.dtype(x.dtype).itemsize

    # VMEM footprint per fused row (minor dims padded to the (8, 128) vreg tile;
    # sized at f32 since the kernel upcasts internally).
    cg_pad = -(-cg // 8) * 8
    hw_pad = -(-hw // 128) * 128
    per_row_vmem = cg_pad * hw_pad * 4

    cap = max(1, _TARGET_BLOCK_BYTES // per_row_vmem)
    if n >= 2:
        cap = min(cap, max(1, n // 2))           # keep >=2 grid steps (megacore)
    gb_tile = _largest_divisor_leq(n, cap)

    # Fused-axis view: exactly the PyTorch x.view(b*groups, cg, h, w) with the
    # spatial dims flattened (layout plumbing only, no compute).
    xr = x.reshape(n, cg, hw)

    # Per-(batch, group) scalars on the fused axis -> trivial in-kernel broadcast.
    w_flat = jnp.broadcast_to(weight.reshape(1, groups), (b, groups))
    w_flat = w_flat.reshape(n, 1, 1).astype(jnp.float32)
    b_flat = jnp.broadcast_to(bias.reshape(1, groups), (b, groups))
    b_flat = b_flat.reshape(n, 1, 1).astype(jnp.float32)

    kernel = functools.partial(_sge_kernel, hw=hw)

    cost = pl.CostEstimate(
        flops=8 * n * cg * hw,
        transcendentals=n * hw,                  # sigmoid (rsqrt is negligible)
        bytes_accessed=2 * n * cg * hw * itemsize,
    )

    block_vmem = gb_tile * cg_pad * hw_pad * itemsize
    f32_block_vmem = gb_tile * cg_pad * hw_pad * 4
    # 2x double-buffered input + output blocks, plus in-kernel f32 working set.
    vmem_needed = 4 * block_vmem + 3 * f32_block_vmem + (2 << 20)
    vmem_limit = int(min(48 << 20, max(32 << 20, vmem_needed)))

    out = pl.pallas_call(
        kernel,
        out_shape=jax.ShapeDtypeStruct((n, cg, hw), x.dtype),
        grid=(n // gb_tile,),
        in_specs=[
            pl.BlockSpec((gb_tile, 1, 1), lambda i: (i, 0, 0)),    # weight
            pl.BlockSpec((gb_tile, 1, 1), lambda i: (i, 0, 0)),    # bias
            pl.BlockSpec((gb_tile, cg, hw), lambda i: (i, 0, 0)),  # x
        ],
        out_specs=pl.BlockSpec((gb_tile, cg, hw), lambda i: (i, 0, 0)),
        compiler_params=pltpu.CompilerParams(
            dimension_semantics=("parallel",),
            vmem_limit_bytes=vmem_limit),
        cost_estimate=cost,
    )(w_flat, b_flat, xr)

    return out.reshape(b, c, h, w)


def sge_reference(x, weight, bias, groups):
    """Pure-JAX reference mirroring the PyTorch forward exactly."""
    b, c, h, w = x.shape
    xg = x.reshape(b * groups, c // groups, h, w).astype(jnp.float32)
    avg = xg.mean(axis=(2, 3), keepdims=True)
    xn = (xg * avg).sum(axis=1, keepdims=True)
    t = xn.reshape(b * groups, -1)
    t = t - t.mean(axis=1, keepdims=True)
    std = jnp.std(t, axis=1, keepdims=True, ddof=1)   # torch default: unbiased
    t = t / std
    t = t.reshape(b, groups, h, w)
    t = t * weight.astype(jnp.float32) + bias.astype(jnp.float32)
    t = t.reshape(b * groups, 1, h, w)
    out = xg * jax.nn.sigmoid(t)
    return out.reshape(b, c, h, w).astype(x.dtype)


def _check(x, weight, bias, groups, atol, rtol):
    out = jax.block_until_ready(spatial_group_enhance(x, weight, bias, groups))
    ref = sge_reference(x, weight, bias, groups)
    assert out.shape == x.shape
    diff = jnp.max(jnp.abs(out.astype(jnp.float32) - ref.astype(jnp.float32)))
    assert jnp.allclose(out.astype(jnp.float32), ref.astype(jnp.float32),
                        atol=atol, rtol=rtol), f"max abs diff {diff}"


if __name__ == "__main__":
    key = jax.random.PRNGKey(0)
    kx, kw, kb, kx2, kw2, kb2 = jax.random.split(key, 6)

    # Case 1: f32, hw a multiple of 128 (fully lane-dense path).
    b, c, h, w, groups = 2, 8, 16, 16, 4
    x = jax.random.normal(kx, (b, c, h, w), dtype=jnp.float32)
    weight = 0.1 * jax.random.normal(kw, (1, groups, 1, 1), dtype=jnp.float32)
    bias = 0.1 * jax.random.normal(kb, (1, groups, 1, 1), dtype=jnp.float32)
    _check(x, weight, bias, groups, atol=1e-5, rtol=1e-5)

    # Case 2: f32, hw = 196 exercises the unaligned-lane (masked tail) path.
    b2, c2, h2, w2, groups2 = 2, 12, 14, 14, 3
    x2 = jax.random.normal(kx2, (b2, c2, h2, w2), dtype=jnp.float32)
    weight2 = 0.1 * jax.random.normal(kw2, (1, groups2, 1, 1), dtype=jnp.float32)
    bias2 = 0.1 * jax.random.normal(kb2, (1, groups2, 1, 1), dtype=jnp.float32)
    _check(x2, weight2, bias2, groups2, atol=1e-5, rtol=1e-5)

    # Case 3: bf16 in HBM end-to-end (kernel upcasts to f32 internally).
    x_bf16 = x.astype(jnp.bfloat16)
    _check(x_bf16, weight, bias, groups, atol=3e-2, rtol=3e-2)

    print("KERNEL_OK")
</pallas_src>

<mosaic_0001>
module attributes {stable_mosaic.version = 11 : i64} {
  func.func @_sge_kernel(%arg0: i32, %arg1: memref<4x1x1xf32, #tpu.memory_space<vmem>>, %arg2: memref<4x1x1xf32, #tpu.memory_space<vmem>>, %arg3: memref<4x2x256xf32, #tpu.memory_space<vmem>>, %arg4: memref<4x2x256xf32, #tpu.memory_space<vmem>>) attributes {dimension_semantics = [#tpu.dimension_semantics<parallel>], iteration_bounds = array<i64: 2>, scalar_prefetch = 0 : i64, scratch_operands = 0 : i64, tpu.core_type = #tpu.core_type<tc>, window_params = [{transform_indices = @transform_0, window_bounds = array<i64: 4, 1, 1>}, {transform_indices = @transform_1, window_bounds = array<i64: 4, 1, 1>}, {transform_indices = @transform_2, window_bounds = array<i64: 4, 2, 256>}, {transform_indices = @transform_3, window_bounds = array<i64: 4, 2, 256>}]} {
    %c0 = arith.constant 0 : index
    %c0_0 = arith.constant 0 : index
    %c0_1 = arith.constant 0 : index
    %0 = vector.load %arg3[%c0, %c0_0, %c0_1] : memref<4x2x256xf32, #tpu.memory_space<vmem>>, vector<4x2x256xf32>
    %cst = arith.constant dense<0.000000e+00> : vector<4x2xf32>
    %1 = vector.multi_reduction <add>, %0, %cst [2] : vector<4x2x256xf32> to vector<4x2xf32>
    %2 = vector.shape_cast %1 : vector<4x2xf32> to vector<4x2x1xf32>
    %cst_2 = arith.constant 3.906250e-03 : f32
    %3 = vector.broadcast %cst_2 : f32 to vector<4x2x1xf32>
    %4 = arith.mulf %2, %3 : vector<4x2x1xf32>
    %5 = vector.broadcast %4 : vector<4x2x1xf32> to vector<4x2x256xf32>
    %6 = arith.mulf %0, %5 : vector<4x2x256xf32>
    %cst_3 = arith.constant dense<0.000000e+00> : vector<4x256xf32>
    %7 = vector.multi_reduction <add>, %6, %cst_3 [1] : vector<4x2x256xf32> to vector<4x256xf32>
    %8 = vector.shape_cast %7 : vector<4x256xf32> to vector<4x1x256xf32>
    %cst_4 = arith.constant dense<0.000000e+00> : vector<4x1xf32>
    %9 = vector.multi_reduction <add>, %8, %cst_4 [2] : vector<4x1x256xf32> to vector<4x1xf32>
    %10 = vector.shape_cast %9 : vector<4x1xf32> to vector<4x1x1xf32>
    %cst_5 = arith.constant 3.906250e-03 : f32
    %11 = vector.broadcast %cst_5 : f32 to vector<4x1x1xf32>
    %12 = arith.mulf %10, %11 : vector<4x1x1xf32>
    %13 = vector.broadcast %12 : vector<4x1x1xf32> to vector<4x1x256xf32>
    %14 = arith.subf %8, %13 : vector<4x1x256xf32>
    %15 = arith.mulf %14, %14 : vector<4x1x256xf32>
    %cst_6 = arith.constant dense<0.000000e+00> : vector<4x1xf32>
    %16 = vector.multi_reduction <add>, %15, %cst_6 [2] : vector<4x1x256xf32> to vector<4x1xf32>
    %17 = vector.shape_cast %16 : vector<4x1xf32> to vector<4x1x1xf32>
    %cst_7 = arith.constant 0.00392156886 : f32
    %18 = vector.broadcast %cst_7 : f32 to vector<4x1x1xf32>
    %19 = arith.mulf %17, %18 : vector<4x1x1xf32>
    %20 = math.rsqrt %19 : vector<4x1x1xf32>
    %21 = vector.broadcast %20 : vector<4x1x1xf32> to vector<4x1x256xf32>
    %22 = arith.mulf %14, %21 : vector<4x1x256xf32>
    %c0_8 = arith.constant 0 : index
    %c0_9 = arith.constant 0 : index
    %c0_10 = arith.constant 0 : index
    %23 = vector.load %arg1[%c0_8, %c0_9, %c0_10] : memref<4x1x1xf32, #tpu.memory_space<vmem>>, vector<4x1x1xf32>
    %24 = vector.broadcast %23 : vector<4x1x1xf32> to vector<4x1x256xf32>
    %25 = arith.mulf %22, %24 : vector<4x1x256xf32>
    %c0_11 = arith.constant 0 : index
    %c0_12 = arith.constant 0 : index
    %c0_13 = arith.constant 0 : index
    %26 = vector.load %arg2[%c0_11, %c0_12, %c0_13] : memref<4x1x1xf32, #tpu.memory_space<vmem>>, vector<4x1x1xf32>
    %27 = vector.broadcast %26 : vector<4x1x1xf32> to vector<4x1x256xf32>
    %28 = arith.addf %25, %27 : vector<4x1x256xf32>
    %29 = arith.negf %28 : vector<4x1x256xf32>
    %30 = math.exp %29 : vector<4x1x256xf32>
    %cst_14 = arith.constant 1.000000e+00 : f32
    %31 = vector.broadcast %cst_14 : f32 to vector<4x1x256xf32>
    %32 = arith.addf %31, %30 : vector<4x1x256xf32>
    %33 = arith.divf %31, %32 : vector<4x1x256xf32>
    %34 = vector.broadcast %33 : vector<4x1x256xf32> to vector<4x2x256xf32>
    %35 = arith.mulf %0, %34 : vector<4x2x256xf32>
    %c0_15 = arith.constant 0 : index
    %c0_16 = arith.constant 0 : index
    %c0_17 = arith.constant 0 : index
    %36 = vector.load %arg4[%c0_15, %c0_16, %c0_17] : memref<4x2x256xf32, #tpu.memory_space<vmem>>, vector<4x2x256xf32>
    tpu.vector_store %arg4[%c0_15, %c0_16, %c0_17], %35 {strides = array<i32>} : memref<4x2x256xf32, #tpu.memory_space<vmem>>, vector<4x2x256xf32>,
    return
  }
  func.func @transform_0(%arg0: i32) -> (i32, i32, i32) {
    %c0_i32 = arith.constant 0 : i32
    %c0_i32_0 = arith.constant 0 : i32
    %c0_i32_1 = arith.constant 0 : i32
    return %arg0, %c0_i32, %c0_i32_0 : i32, i32, i32
  }
  func.func @transform_1(%arg0: i32) -> (i32, i32, i32) {
    %c0_i32 = arith.constant 0 : i32
    %c0_i32_0 = arith.constant 0 : i32
    %c0_i32_1 = arith.constant 0 : i32
    return %arg0, %c0_i32, %c0_i32_0 : i32, i32, i32
  }
  func.func @transform_2(%arg0: i32) -> (i32, i32, i32) {
    %c0_i32 = arith.constant 0 : i32
    %c0_i32_0 = arith.constant 0 : i32
    %c0_i32_1 = arith.constant 0 : i32
    return %arg0, %c0_i32, %c0_i32_0 : i32, i32, i32
  }
  func.func @transform_3(%arg0: i32) -> (i32, i32, i32) {
    %c0_i32 = arith.constant 0 : i32
    %c0_i32_0 = arith.constant 0 : i32
    %c0_i32_1 = arith.constant 0 : i32
    return %arg0, %c0_i32, %c0_i32_0 : i32, i32, i32
  }
}

</mosaic_0001>

<llo_original>
// kernel: tpu_custom_call.1
$region0: #{tpu_custom_call.1}
  #allocation0 [shape = 'u32[]', space=smem, size = 0x4, offset = 0x4, fixed_abs, tag = 'smem constant byte address 0x4 - core index']
  #allocation1 [shape = 'u32[144,128]{1,0:T(1,128)}', space=vmem, size = 0x12000, scoped, tag = 'internal scratch']
  %s0 = inlined_call_operand.vmem [shape: f32[8,1,1], index: 0, kind: input, shape index: {}]
  %s1 = inlined_call_operand.vmem [shape: f32[8,1,1], index: 1, kind: input, shape index: {}]
  %s2 = inlined_call_operand.hbm [shape: f32[8,2,256], index: 2, kind: input, shape index: {}]
  %s3 = inlined_call_operand.hbm [shape: f32[8,2,256], index: 3, kind: output, shape index: {}]
  %s4 = sld [smem:[#allocation0]]
  $region49: #{tpu_custom_call.1} parent=0
    _
  %s6 = ssub.s32 1, %s4
  %s7 = scalar_select 0, %s6, %s4
  $region1: #{tpu_custom_call.1} parent=0
    #allocation2 [shape = 'u8[16384]{0}', space=vmem, size = 0x4000, scoped, tag = 'input window, operand 2']
    #allocation3 [shape = 's32[2]{0}', space=sflag, size = 0x8, scoped, tag = 'scoped memory for tpu_custom_call.1']
    #allocation4 [shape = 's32[2]{0}', space=sflag, size = 0x8, scoped, tag = 'scoped memory for tpu_custom_call.1']
    #allocation5 [shape = 'u8[16384]{0}', space=vmem, size = 0x4000, scoped, tag = 'output window, operand 0']
    %8 = vsyncpa [#allocation3], 0
    %s9 = scalar_lea.sflag [#allocation3], 1
    %10 = vsyncpa %s9, 0
    %11 = vsyncpa [#allocation4], 0
    %s12 = scalar_lea.sflag [#allocation4], 1
    %13 = vsyncpa %s12, 0
    loop: start=0, step=1, limit=4
    $region2: #{tpu_custom_call.1} parent=1 // loop_pre_header
      _
    $region3: #{tpu_custom_call.1} parent=1 // loop_header
      %s15 = sphi 0, %s19
      %p16 = scmp.ge.s32.totalorder %s15, 4
      %s25 = sphi 0, %s27
      %s28 = sphi 0, %s25
      %s29 = sphi 0, %s28
      %s45 = sphi 0, %s29
      %s51 = sphi 0, %s53
      %s54 = sphi 0, %s51
      %s55 = sphi 0, %s54
      %s71 = sphi 0, %s55
      %s77 = sphi 0, %s79
      %s80 = sphi 0, %s77
      %s81 = sphi 0, %s80
      %s97 = sphi 0, %s81
      %s103 = sphi 0, %s105
      %s106 = sphi 0, %s103
      %s107 = sphi 0, %s106
      %s123 = sphi 0, %s107
    $region4: #{tpu_custom_call.1} parent=1 // loop_header_branch
      %18 = sbr.rel (%p16) target = $region8
    $region5: #{tpu_custom_call.1} parent=1 // loop_body
      %s20 = ssub.s32 %s15, 1
      %s21 = ssub.s32 %s15, 2
      %s22 = sadd.s32 %s15, 1
      %s23 = ssub.s32 %s15, %s22
      %p24 = scmp.eq.s32.totalorder %s23, 0
      %s26 = sadd.s32 %s25, 1
      %s27 = scalar_select %p24, %s25, %s26
      %p30 = pneg %p24
      %p31 = scmp.eq.s32.totalorder %s15, 1
      %p32 = por %p30, %p31
      %p33 = scmp.ne.s32.totalorder %s25, %s28
      %p34 = scmp.eq.s32.totalorder %s15, 0
      %p35 = por %p33, %p34
      %p36 = scmp.ne.s32.totalorder %s25, %s28
      %p37 = scmp.eq.s32.totalorder %s20, 1
      %p38 = por %p36, %p37
      %p39 = scmp.ne.s32.totalorder %s28, %s29
      %p40 = scmp.eq.s32.totalorder %s20, 0
      %p41 = por %p39, %p40
      %p42 = scmp.ne.s32.totalorder %s28, %s29
      %p43 = scmp.eq.s32.totalorder %s21, 1
      %p44 = por %p42, %p43
      %p46 = scmp.ne.s32.totalorder %s29, %s45
      %p47 = scmp.eq.s32.totalorder %s21, 0
      %p48 = por %p46, %p47
      %s49 = ssub.s32 %s15, %s22
      %p50 = scmp.eq.s32.totalorder %s49, 0
      %s52 = sadd.s32 %s51, 1
      %s53 = scalar_select %p50, %s51, %s52
      %p56 = pneg %p50
      %p57 = scmp.eq.s32.totalorder %s15, 1
      %p58 = por %p56, %p57
      %p59 = scmp.ne.s32.totalorder %s51, %s54
      %p60 = scmp.eq.s32.totalorder %s15, 0
      %p61 = por %p59, %p60
      %p62 = scmp.ne.s32.totalorder %s51, %s54
      %p63 = scmp.eq.s32.totalorder %s20, 1
      %p64 = por %p62, %p63
      %p65 = scmp.ne.s32.totalorder %s54, %s55
      %p66 = scmp.eq.s32.totalorder %s20, 0
      %p67 = por %p65, %p66
      %p68 = scmp.ne.s32.totalorder %s54, %s55
      %p69 = scmp.eq.s32.totalorder %s21, 1
      %p70 = por %p68, %p69
      %p72 = scmp.ne.s32.totalorder %s55, %s71
      %p73 = scmp.eq.s32.totalorder %s21, 0
      %p74 = por %p72, %p73
      %s75 = ssub.s32 %s15, %s22
      %p76 = scmp.eq.s32.totalorder %s75, 0
      %s78 = sadd.s32 %s77, 1
      %s79 = scalar_select %p76, %s77, %s78
      %p82 = pneg %p76
      %p83 = scmp.eq.s32.totalorder %s15, 1
      %p84 = por %p82, %p83
      %p85 = scmp.ne.s32.totalorder %s77, %s80
      %p86 = scmp.eq.s32.totalorder %s15, 0
      %p87 = por %p85, %p86
      %p88 = scmp.ne.s32.totalorder %s77, %s80
      %p89 = scmp.eq.s32.totalorder %s20, 1
      %p90 = por %p88, %p89
      %p91 = scmp.ne.s32.totalorder %s80, %s81
      %p92 = scmp.eq.s32.totalorder %s20, 0
      %p93 = por %p91, %p92
      %p94 = scmp.ne.s32.totalorder %s80, %s81
      %p95 = scmp.eq.s32.totalorder %s21, 1
      %p96 = por %p94, %p95
      %p98 = scmp.ne.s32.totalorder %s81, %s97
      %p99 = scmp.eq.s32.totalorder %s21, 0
      %p100 = por %p98, %p99
      %s101 = ssub.s32 %s15, %s22
      %p102 = scmp.eq.s32.totalorder %s101, 0
      %s104 = sadd.s32 %s103, 1
      %s105 = scalar_select %p102, %s103, %s104
      %p108 = pneg %p102
      %p109 = scmp.eq.s32.totalorder %s15, 1
      %p110 = por %p108, %p109
      %p111 = scmp.ne.s32.totalorder %s103, %s106
      %p112 = scmp.eq.s32.totalorder %s15, 0
      %p113 = por %p111, %p112
      %p114 = scmp.ne.s32.totalorder %s103, %s106
      %p115 = scmp.eq.s32.totalorder %s20, 1
      %p116 = por %p114, %p115
      %p117 = scmp.ne.s32.totalorder %s106, %s107
      %p118 = scmp.eq.s32.totalorder %s20, 0
      %p119 = por %p117, %p118
      %p120 = scmp.ne.s32.totalorder %s106, %s107
      %p121 = scmp.eq.s32.totalorder %s21, 1
      %p122 = por %p120, %p121
      %p124 = scmp.ne.s32.totalorder %s107, %s123
      %p125 = scmp.eq.s32.totalorder %s21, 0
      %p126 = por %p124, %p125
      %p127 = scmp.le.s32.totalorder 1, %s15
      %p128 = scmp.lt.s32.totalorder %s15, 3
      %p129 = pnand %p127, %p128
      %p130 = pneg %p129
      // Predicated region
      $region9: #{tpu_custom_call.1} parent=5 // pred_check
        _
      $region10: #{tpu_custom_call.1} parent=5 // pred_check_branch
        %132 = sbr.rel (%p129) target = $region12
      $region11: #{tpu_custom_call.1} parent=5 // pred_region
        %s133 = ssub.s32 %s15, 1
      $region12: #{tpu_custom_call.1} parent=5 // pred_fallthru
        _
      %p134 = scmp.lt.s32.totalorder %s15, 2
      // Predicated region
      $region13: #{tpu_custom_call.1} parent=5 // pred_check
        %p135 = pneg %p134
      $region14: #{tpu_custom_call.1} parent=5 // pred_check_branch
        %137 = sbr.rel (%p135) target = $region16
      $region15: #{tpu_custom_call.1} parent=5 // pred_region
        // Predicated region
        $region17: #{tpu_custom_call.1} parent=15 // pred_check
          %p138 = pneg %p35
        $region18: #{tpu_custom_call.1} parent=15 // pred_check_branch
          %140 = sbr.rel (%p138) target = $region20
        $region19: #{tpu_custom_call.1} parent=15 // pred_region
          %s141 = smul.u32 4, %s15
          %p142 = scmp.lt.s32.totalorder %s141, 7
          %s143 = scalar_select %p142, %s141, 7
          %s144 = scalar_lea.vmem %s0, %s143
          %s145 = smul.u32 4, %s15
        $region20: #{tpu_custom_call.1} parent=15 // pred_fallthru
          _
        // Predicated region
        $region21: #{tpu_custom_call.1} parent=15 // pred_check
          %p146 = pneg %p61
        $region22: #{tpu_custom_call.1} parent=15 // pred_check_branch
          %148 = sbr.rel (%p146) target = $region24
        $region23: #{tpu_custom_call.1} parent=15 // pred_region
          %s149 = smul.u32 4, %s15
          %p150 = scmp.lt.s32.totalorder %s149, 7
          %s151 = scalar_select %p150, %s149, 7
          %s152 = scalar_lea.vmem %s1, %s151
          %s153 = smul.u32 4, %s15
        $region24: #{tpu_custom_call.1} parent=15 // pred_fallthru
          _
        // Predicated region
        $region25: #{tpu_custom_call.1} parent=15 // pred_check
          %p154 = pneg %p87
        $region26: #{tpu_custom_call.1} parent=15 // pred_check_branch
          %156 = sbr.rel (%p154) target = $region28
        $region27: #{tpu_custom_call.1} parent=15 // pred_region
          %s157 = sand.u32 %s77, 1
          %s158 = scalar_lea.sflag [#allocation3], %s157
          %s159 = sand.u32 %s77, 1
          %s160 = smul.addr %s159, 16
          %s161 = scalar_lea.vmem [#allocation2], %s160
          %s162 = smul.u32 4, %s15
          %s164 = ssub.s32 256, 256
          %165 = vsyncadd %s158, %s164
          %s166 = smul.addr %s162, 2
          %s167 = smul.addr %s166, 32
          %s168 = scalar_lea.hbm %s2, %s167
          %s169 = sshll.u32 %s161, 4
          %s170 = int_to_ptr.vmem [resolvable:$true] %s169
          %175 = dma.hbm_to_vmem [thread:$0]  %s168, 256, %s170, %s158, 64, 64, 4
        $region28: #{tpu_custom_call.1} parent=15 // pred_fallthru
          _
      $region16: #{tpu_custom_call.1} parent=5 // pred_fallthru
        _
      %p176 = scmp.le.s32.totalorder 1, %s15
      %p177 = scmp.lt.s32.totalorder %s15, 3
      %p178 = pnand %p176, %p177
      %p179 = pneg %p178
      // Predicated region
      $region29: #{tpu_custom_call.1} parent=5 // pred_check
        _
      $region30: #{tpu_custom_call.1} parent=5 // pred_check_branch
        %181 = sbr.rel (%p178) target = $region32
      $region31: #{tpu_custom_call.1} parent=5 // pred_region
        %s182 = ssub.s32 %s15, 1
        %s183 = sand.u32 %s80, 1
        %s184 = scalar_lea.sflag [#allocation3], %s183
        %s185 = sand.u32 %s80, 1
        %s186 = smul.addr %s185, 16
        %s187 = scalar_lea.vmem [#allocation2], %s186
        // Predicated region
        $region33: #{tpu_custom_call.1} parent=31 // pred_check
          %p188 = pneg %p93
        $region34: #{tpu_custom_call.1} parent=31 // pred_check_branch
          %190 = sbr.rel (%p188) target = $region36
        $region35: #{tpu_custom_call.1} parent=31 // pred_region
          %191 = dma.done %s184, 256
        $region36: #{tpu_custom_call.1} parent=31 // pred_fallthru
          _
        %s192 = smul.u32 4, %s20
        %p193 = scmp.lt.s32.totalorder %s192, 7
        %s194 = scalar_select %p193, %s192, 7
        %s195 = scalar_lea.vmem %s0, %s194
        %p196 = pneg %p41
        %p197 = pneg %p38
        %s198 = smul.u32 4, %s20
        %p199 = scmp.lt.s32.totalorder %s198, 7
        %s200 = scalar_select %p199, %s198, 7
        %s201 = scalar_lea.vmem %s1, %s200
        %p202 = pneg %p67
        %p203 = pneg %p64
        %s204 = sand.u32 %s80, 1
        %s205 = scalar_lea.sflag [#allocation3], %s204
        %s206 = sand.u32 %s80, 1
        %s207 = smul.addr %s206, 16
        %s208 = scalar_lea.vmem [#allocation2], %s207
        %p209 = pneg %p93
        %p210 = pneg %p90
        %p211 = pneg %p119
        %p212 = pneg %p116
        %s213 = sand.u32 %s106, 1
        %s214 = scalar_lea.sflag [#allocation4], %s213
        %s215 = sand.u32 %s106, 1
        %s216 = smul.addr %s215, 16
        %s217 = scalar_lea.vmem [#allocation5], %s216
        %s218 = smul.u32 4, %s20
        %p219 = scmp.lt.s32.totalorder %s218, 7
        %s220 = scalar_select %p219, %s218, 7
        %s221 = scalar_lea.vmem %s0, %s220
        %s222 = smul.u32 4, %s20
        %s223 = smul.u32 4, %s20
        %p224 = scmp.lt.s32.totalorder %s223, 7
        %s225 = scalar_select %p224, %s223, 7
        %s226 = scalar_lea.vmem %s1, %s225
        %s227 = smul.u32 4, %s20
        %s228 = smul.u32 4, %s20
        %s229 = smul.u32 4, %s20
        %v230 = vld [vmem:[%s187] sm:$0xf]
        %v231 = vld [vmem:[%s187 + $0x4] sm:$0xf]
        %v232 = vld [vmem:[%s187 + $0x8] sm:$0xf]
        %v233 = vld [vmem:[%s187 + $0xc] sm:$0xf]
        %v239 = vunpack.c.l.s4 1983009808
        %v240 = vunpack.c.0.s8 %v239
        %v241 = vlaneseq
        %v242 = vshrl.u32 %v241, 7
        %v243 = vsub.s32 %v240, %v242
        %v244 = vrot.slane %v230, %v243
        %v245 = vcombine.high %v244, %v244
        %v247 = vunpack.c.l.s4 1983009808
        %v248 = vunpack.c.0.s8 %v247
        %v249 = vlaneseq
        %v250 = vshrl.u32 %v249, 7
        %v251 = vsub.s32 %v248, %v250
        %v252 = vrot.slane %v231, %v251
        %v253 = vcombine.high %v252, %v252
        %v255 = vunpack.c.l.s4 1983009808
        %v256 = vunpack.c.0.s8 %v255
        %v257 = vlaneseq
        %v258 = vshrl.u32 %v257, 7
        %v259 = vsub.s32 %v256, %v258
        %v260 = vrot.slane %v232, %v259
        %v261 = vcombine.high %v260, %v260
        %v263 = vunpack.c.l.s4 1983009808
        %v264 = vunpack.c.0.s8 %v263
        %v265 = vlaneseq
        %v266 = vshrl.u32 %v265, 7
        %v267 = vsub.s32 %v264, %v266
        %v268 = vrot.slane %v233, %v267
        %v269 = vcombine.high %v268, %v268
        %vm278 = vcmask 1041408
        %v279 = vsel %vm278, %v244, 0.0
        %v280 = vsel %vm278, %v245, 0.0
        %v281 = vadd.f32 %v279, %v280
        %282 = vadd.xlane.f32.xlu0 %v281
        %v283 = vpop.xlane.xlu0 %282
        %v284 = vsel %vm278, %v252, 0.0
        %v285 = vsel %vm278, %v253, 0.0
        %v286 = vadd.f32 %v284, %v285
        %287 = vadd.xlane.f32.xlu0 %v286
        %v288 = vpop.xlane.xlu0 %287
        %v289 = vsel %vm278, %v260, 0.0
        %v290 = vsel %vm278, %v261, 0.0
        %v291 = vadd.f32 %v289, %v290
        %292 = vadd.xlane.f32.xlu0 %v291
        %v293 = vpop.xlane.xlu0 %292
        %v294 = vsel %vm278, %v268, 0.0
        %v295 = vsel %vm278, %v269, 0.0
        %v296 = vadd.f32 %v294, %v295
        %297 = vadd.xlane.f32.xlu0 %v296
        %v298 = vpop.xlane.xlu0 %297
        %v299 = vmul.f32 %v283, 0.00390625
        %v300 = vmul.f32 %v288, 0.00390625
        %v301 = vmul.f32 %v293, 0.00390625
        %v302 = vmul.f32 %v298, 0.00390625
        %v308 = vunpack.c.l.s4 269488144
        %v309 = vunpack.c.0.s8 %v308
        %v310 = vlaneseq
        %v311 = vshrl.u32 %v310, 7
        %v312 = vsub.s32 %v309, %v311
        %v313 = vrot.slane %v299, %v312
        %v315 = vunpack.c.l.s4 269488144
        %v316 = vunpack.c.0.s8 %v315
        %v317 = vlaneseq
        %v318 = vshrl.u32 %v317, 7
        %v319 = vsub.s32 %v316, %v318
        %v320 = vrot.slane %v300, %v319
        %v322 = vunpack.c.l.s4 269488144
        %v323 = vunpack.c.0.s8 %v322
        %v324 = vlaneseq
        %v325 = vshrl.u32 %v324, 7
        %v326 = vsub.s32 %v323, %v325
        %v327 = vrot.slane %v301, %v326
        %v329 = vunpack.c.l.s4 269488144
        %v330 = vunpack.c.0.s8 %v329
        %v331 = vlaneseq
        %v332 = vshrl.u32 %v331, 7
        %v333 = vsub.s32 %v330, %v332
        %v334 = vrot.slane %v302, %v333
        %v339 = vmul.f32 %v230, %v313
        %v340 = vmul.f32 %v231, %v320
        %v341 = vmul.f32 %v232, %v327
        %v342 = vmul.f32 %v233, %v334
        %v348 = vunpack.c.l.s4 1983009808
        %v349 = vunpack.c.0.s8 %v348
        %v350 = vlaneseq
        %v351 = vshrl.u32 %v350, 7
        %v352 = vsub.s32 %v349, %v351
        %v353 = vrot.slane %v339, %v352
        %v354 = vcombine.high %v353, %v353
        %v356 = vunpack.c.l.s4 1983009808
        %v357 = vunpack.c.0.s8 %v356
        %v358 = vlaneseq
        %v359 = vshrl.u32 %v358, 7
        %v360 = vsub.s32 %v357, %v359
        %v361 = vrot.slane %v340, %v360
        %v362 = vcombine.high %v361, %v361
        %v364 = vunpack.c.l.s4 1983009808
        %v365 = vunpack.c.0.s8 %v364
        %v366 = vlaneseq
        %v367 = vshrl.u32 %v366, 7
        %v368 = vsub.s32 %v365, %v367
        %v369 = vrot.slane %v341, %v368
        %v370 = vcombine.high %v369, %v369
        %v372 = vunpack.c.l.s4 1983009808
        %v373 = vunpack.c.0.s8 %v372
        %v374 = vlaneseq
        %v375 = vshrl.u32 %v374, 7
        %v376 = vsub.s32 %v373, %v375
        %v377 = vrot.slane %v342, %v376
        %v378 = vcombine.high %v377, %v377
        %v387 = vsel %vm278, %v353, 0.0
        %v388 = vrot.slane %v387, 4
        %v389 = vadd.f32 %v387, %v388
        %v390 = vrot.slane %v389, 2
        %v391 = vadd.f32 %v389, %v390
        %v392 = vrot.slane %v391, 1
        %v393 = vadd.f32 %v391, %v392
        %v394 = vsel %vm278, %v354, 0.0
        %v395 = vrot.slane %v394, 4
        %v396 = vadd.f32 %v394, %v395
        %v397 = vrot.slane %v396, 2
        %v398 = vadd.f32 %v396, %v397
        %v399 = vrot.slane %v398, 1
        %v400 = vadd.f32 %v398, %v399
        %v401 = vsel %vm278, %v361, 0.0
        %v402 = vrot.slane %v401, 4
        %v403 = vadd.f32 %v401, %v402
        %v404 = vrot.slane %v403, 2
        %v405 = vadd.f32 %v403, %v404
        %v406 = vrot.slane %v405, 1
        %v407 = vadd.f32 %v405, %v406
        %v408 = vsel %vm278, %v362, 0.0
        %v409 = vrot.slane %v408, 4
        %v410 = vadd.f32 %v408, %v409
        %v411 = vrot.slane %v410, 2
        %v412 = vadd.f32 %v410, %v411
        %v413 = vrot.slane %v412, 1
        %v414 = vadd.f32 %v412, %v413
        %v415 = vsel %vm278, %v369, 0.0
        %v416 = vrot.slane %v415, 4
        %v417 = vadd.f32 %v415, %v416
        %v418 = vrot.slane %v417, 2
        %v419 = vadd.f32 %v417, %v418
        %v420 = vrot.slane %v419, 1
        %v421 = vadd.f32 %v419, %v420
        %v422 = vsel %vm278, %v370, 0.0
        %v423 = vrot.slane %v422, 4
        %v424 = vadd.f32 %v422, %v423
        %v425 = vrot.slane %v424, 2
        %v426 = vadd.f32 %v424, %v425
        %v427 = vrot.slane %v426, 1
        %v428 = vadd.f32 %v426, %v427
        %v429 = vsel %vm278, %v377, 0.0
        %v430 = vrot.slane %v429, 4
        %v431 = vadd.f32 %v429, %v430
        %v432 = vrot.slane %v431, 2
        %v433 = vadd.f32 %v431, %v432
        %v434 = vrot.slane %v433, 1
        %v435 = vadd.f32 %v433, %v434
        %v436 = vsel %vm278, %v378, 0.0
        %v437 = vrot.slane %v436, 4
        %v438 = vadd.f32 %v436, %v437
        %v439 = vrot.slane %v438, 2
        %v440 = vadd.f32 %v438, %v439
        %v441 = vrot.slane %v440, 1
        %v442 = vadd.f32 %v440, %v441
        %v443 = vadd.f32 %v393, %v400
        %444 = vadd.xlane.f32.xlu0 %v443
        %v445 = vpop.xlane.xlu0 %444
        %v446 = vadd.f32 %v407, %v414
        %447 = vadd.xlane.f32.xlu0 %v446
        %v448 = vpop.xlane.xlu0 %447
        %v449 = vadd.f32 %v421, %v428
        %450 = vadd.xlane.f32.xlu0 %v449
        %v451 = vpop.xlane.xlu0 %450
        %v452 = vadd.f32 %v435, %v442
        %453 = vadd.xlane.f32.xlu0 %v452
        %v454 = vpop.xlane.xlu0 %453
        %v455 = vmul.f32 %v445, 0.00390625
        %v456 = vmul.f32 %v448, 0.00390625
        %v457 = vmul.f32 %v451, 0.00390625
        %v458 = vmul.f32 %v454, 0.00390625
        %v459 = vsub.f32 %v393, %v455
        %v460 = vsub.f32 %v400, %v455
        %v461 = vsub.f32 %v407, %v456
        %v462 = vsub.f32 %v414, %v456
        %v463 = vsub.f32 %v421, %v457
        %v464 = vsub.f32 %v428, %v457
        %v465 = vsub.f32 %v435, %v458
        %v466 = vsub.f32 %v442, %v458
        %v467 = vmul.f32 %v459, %v459
        %v468 = vmul.f32 %v460, %v460
        %v469 = vmul.f32 %v461, %v461
        %v470 = vmul.f32 %v462, %v462
        %v471 = vmul.f32 %v463, %v463
        %v472 = vmul.f32 %v464, %v464
        %v473 = vmul.f32 %v465, %v465
        %v474 = vmul.f32 %v466, %v466
        %v475 = vadd.f32 %v467, %v468
        %476 = vadd.xlane.f32.xlu0 %v475
        %v477 = vpop.xlane.xlu0 %476
        %v478 = vadd.f32 %v469, %v470
        %479 = vadd.xlane.f32.xlu0 %v478
        %v480 = vpop.xlane.xlu0 %479
        %v481 = vadd.f32 %v471, %v472
        %482 = vadd.xlane.f32.xlu0 %v481
        %v483 = vpop.xlane.xlu0 %482
        %v484 = vadd.f32 %v473, %v474
        %485 = vadd.xlane.f32.xlu0 %v484
        %v486 = vpop.xlane.xlu0 %485
        %v487 = vmul.f32 %v477, 0.003921569
        %v488 = vmul.f32 %v480, 0.003921569
        %v489 = vmul.f32 %v483, 0.003921569
        %v490 = vmul.f32 %v486, 0.003921569
        %v491 = vrsqrt.pop %v487
        %v492 = vrsqrt.pop %v488
        %v493 = vrsqrt.pop %v489
        %v494 = vrsqrt.pop %v490
        %v495 = vmul.f32 %v459, %v491
        %v496 = vmul.f32 %v460, %v491
        %v497 = vmul.f32 %v461, %v492
        %v498 = vmul.f32 %v462, %v492
        %v499 = vmul.f32 %v463, %v493
        %v500 = vmul.f32 %v464, %v493
        %v501 = vmul.f32 %v465, %v494
        %v502 = vmul.f32 %v466, %v494
        %v503 = vld [vmem:[%s221] sm:$0x1]
        %v504 = vld [vmem:[%s221 + $0x1] sm:$0x1]
        %v505 = vld [vmem:[%s221 + $0x2] sm:$0x1]
        %v506 = vld [vmem:[%s221 + $0x3] sm:$0x1]
        %508 = vset.pattern.permute.xlu0 0
        %509 = vperm.xlu0 %508, %v503
        %v510 = vpop.permute.xlu0 %509
        %v512 = vlaneseq
        %v513 = vshrl.u32 %v512, 7
        %v514 = vsub.s32 0, %v513
        %v515 = vrot.slane %v510, %v514
        %517 = vset.pattern.permute.xlu0 0
        %518 = vperm.xlu0 %517, %v504
        %v519 = vpop.permute.xlu0 %518
        %v521 = vlaneseq
        %v522 = vshrl.u32 %v521, 7
        %v523 = vsub.s32 0, %v522
        %v524 = vrot.slane %v519, %v523
        %526 = vset.pattern.permute.xlu0 0
        %527 = vperm.xlu0 %526, %v505
        %v528 = vpop.permute.xlu0 %527
        %v530 = vlaneseq
        %v531 = vshrl.u32 %v530, 7
        %v532 = vsub.s32 0, %v531
        %v533 = vrot.slane %v528, %v532
        %535 = vset.pattern.permute.xlu0 0
        %536 = vperm.xlu0 %535, %v506
        %v537 = vpop.permute.xlu0 %536
        %v539 = vlaneseq
        %v540 = vshrl.u32 %v539, 7
        %v541 = vsub.s32 0, %v540
        %v542 = vrot.slane %v537, %v541
        %v543 = vmul.f32 %v495, %v515
        %v544 = vmul.f32 %v496, %v515
        %v545 = vmul.f32 %v497, %v524
        %v546 = vmul.f32 %v498, %v524
        %v547 = vmul.f32 %v499, %v533
        %v548 = vmul.f32 %v500, %v533
        %v549 = vmul.f32 %v501, %v542
        %v550 = vmul.f32 %v502, %v542
        %v551 = vld [vmem:[%s226] sm:$0x1]
        %v552 = vld [vmem:[%s226 + $0x1] sm:$0x1]
        %v553 = vld [vmem:[%s226 + $0x2] sm:$0x1]
        %v554 = vld [vmem:[%s226 + $0x3] sm:$0x1]
        %556 = vset.pattern.permute.xlu0 0
        %557 = vperm.xlu0 %556, %v551
        %v558 = vpop.permute.xlu0 %557
        %v560 = vlaneseq
        %v561 = vshrl.u32 %v560, 7
        %v562 = vsub.s32 0, %v561
        %v563 = vrot.slane %v558, %v562
        %565 = vset.pattern.permute.xlu0 0
        %566 = vperm.xlu0 %565, %v552
        %v567 = vpop.permute.xlu0 %566
        %v569 = vlaneseq
        %v570 = vshrl.u32 %v569, 7
        %v571 = vsub.s32 0, %v570
        %v572 = vrot.slane %v567, %v571
        %574 = vset.pattern.permute.xlu0 0
        %575 = vperm.xlu0 %574, %v553
        %v576 = vpop.permute.xlu0 %575
        %v578 = vlaneseq
        %v579 = vshrl.u32 %v578, 7
        %v580 = vsub.s32 0, %v579
        %v581 = vrot.slane %v576, %v580
        %583 = vset.pattern.permute.xlu0 0
        %584 = vperm.xlu0 %583, %v554
        %v585 = vpop.permute.xlu0 %584
        %v587 = vlaneseq
        %v588 = vshrl.u32 %v587, 7
        %v589 = vsub.s32 0, %v588
        %v590 = vrot.slane %v585, %v589
        %v591 = vadd.f32 %v543, %v563
        %v592 = vadd.f32 %v544, %v563
        %v593 = vadd.f32 %v545, %v572
        %v594 = vadd.f32 %v546, %v572
        %v595 = vadd.f32 %v547, %v581
        %v596 = vadd.f32 %v548, %v581
        %v597 = vadd.f32 %v549, %v590
        %v598 = vadd.f32 %v550, %v590
        %v599 = vxor.u32 %v591, 2147483648
        %v600 = vxor.u32 %v592, 2147483648
        %v601 = vxor.u32 %v593, 2147483648
        %v602 = vxor.u32 %v594, 2147483648
        %v603 = vxor.u32 %v595, 2147483648
        %v604 = vxor.u32 %v596, 2147483648
        %v605 = vxor.u32 %v597, 2147483648
        %v606 = vxor.u32 %v598, 2147483648
        %v607 = vmul.f32 %v599, 1.442695
        %v608 = vpow.pop %v607
        %v609 = vmul.f32 %v600, 1.442695
        %v610 = vpow.pop %v609
        %v611 = vmul.f32 %v601, 1.442695
        %v612 = vpow.pop %v611
        %v613 = vmul.f32 %v602, 1.442695
        %v614 = vpow.pop %v613
        %v615 = vmul.f32 %v603, 1.442695
        %v616 = vpow.pop %v615
        %v617 = vmul.f32 %v604, 1.442695
        %v618 = vpow.pop %v617
        %v619 = vmul.f32 %v605, 1.442695
        %v620 = vpow.pop %v619
        %v621 = vmul.f32 %v606, 1.442695
        %v622 = vpow.pop %v621
        %v623 = vadd.f32 %v608, 1.0
        %v624 = vadd.f32 %v610, 1.0
        %v625 = vadd.f32 %v612, 1.0
        %v626 = vadd.f32 %v614, 1.0
        %v627 = vadd.f32 %v616, 1.0
        %v628 = vadd.f32 %v618, 1.0
        %v629 = vadd.f32 %v620, 1.0
        %v630 = vadd.f32 %v622, 1.0
        %v631 = vrcp.pop %v623
        %v632 = vmul.f32 1.0, %v631
        %v633 = vrcp.pop %v624
        %v634 = vmul.f32 1.0, %v633
        %v635 = vrcp.pop %v625
        %v636 = vmul.f32 1.0, %v635
        %v637 = vrcp.pop %v626
        %v638 = vmul.f32 1.0, %v637
        %v639 = vrcp.pop %v627
        %v640 = vmul.f32 1.0, %v639
        %v641 = vrcp.pop %v628
        %v642 = vmul.f32 1.0, %v641
        %v643 = vrcp.pop %v629
        %v644 = vmul.f32 1.0, %v643
        %v645 = vrcp.pop %v630
        %v646 = vmul.f32 1.0, %v645
        %v655 = vcombine.low %v632, %v634
        %v657 = vunpack.c.l.s4 1983009808
        %v658 = vunpack.c.0.s8 %v657
        %v659 = vlaneseq
        %v660 = vshrl.u32 %v659, 7
        %v661 = vsub.s32 %v658, %v660
        %v662 = vrot.slane %v655, %v661
        %v663 = vcombine.low %v636, %v638
        %v665 = vunpack.c.l.s4 1983009808
        %v666 = vunpack.c.0.s8 %v665
        %v667 = vlaneseq
        %v668 = vshrl.u32 %v667, 7
        %v669 = vsub.s32 %v666, %v668
        %v670 = vrot.slane %v663, %v669
        %v671 = vcombine.low %v640, %v642
        %v673 = vunpack.c.l.s4 1983009808
        %v674 = vunpack.c.0.s8 %v673
        %v675 = vlaneseq
        %v676 = vshrl.u32 %v675, 7
        %v677 = vsub.s32 %v674, %v676
        %v678 = vrot.slane %v671, %v677
        %v679 = vcombine.low %v644, %v646
        %v681 = vunpack.c.l.s4 1983009808
        %v682 = vunpack.c.0.s8 %v681
        %v683 = vlaneseq
        %v684 = vshrl.u32 %v683, 7
        %v685 = vsub.s32 %v682, %v684
        %v686 = vrot.slane %v679, %v685
        %v691 = vmul.f32 %v230, %v662
        %v692 = vmul.f32 %v231, %v670
        %v693 = vmul.f32 %v232, %v678
        %v694 = vmul.f32 %v233, %v686
        %695 = vst [vmem:[%s217] sm:$0xf] %v691
        %696 = vst [vmem:[%s217 + $0x4] sm:$0xf] %v692
        %697 = vst [vmem:[%s217 + $0x8] sm:$0xf] %v693
        %698 = vst [vmem:[%s217 + $0xc] sm:$0xf] %v694
        %s699 = sand.u32 %s106, 1
        %s700 = scalar_lea.sflag [#allocation4], %s699
        %s701 = sand.u32 %s106, 1
        %s702 = smul.addr %s701, 16
        %s703 = scalar_lea.vmem [#allocation5], %s702
        // Predicated region
        $region37: #{tpu_custom_call.1} parent=31 // pred_check
          %p704 = pneg %p116
        $region38: #{tpu_custom_call.1} parent=31 // pred_check_branch
          %706 = sbr.rel (%p704) target = $region40
        $region39: #{tpu_custom_call.1} parent=31 // pred_region
          %s707 = smul.u32 4, %s20
          %s709 = ssub.s32 256, 256
          %710 = vsyncadd %s700, %s709
          %s711 = smul.addr %s707, 2
          %s712 = smul.addr %s711, 32
          %s713 = scalar_lea.hbm %s3, %s712
          %s714 = sshll.u32 %s703, 4
          %s715 = int_to_ptr.vmem [resolvable:$true] %s714
          %720 = dma.vmem_to_hbm [thread:$0]  %s715, 256, %s713, %s700, 64, 64, 4
        $region40: #{tpu_custom_call.1} parent=31 // pred_fallthru
          _
      $region32: #{tpu_custom_call.1} parent=5 // pred_fallthru
        _
      %p721 = scmp.le.s32.totalorder 2, %s15
      // Predicated region
      $region41: #{tpu_custom_call.1} parent=5 // pred_check
        %p722 = pneg %p721
      $region42: #{tpu_custom_call.1} parent=5 // pred_check_branch
        %724 = sbr.rel (%p722) target = $region44
      $region43: #{tpu_custom_call.1} parent=5 // pred_region
        %s725 = ssub.s32 %s15, 2
        // Predicated region
        $region45: #{tpu_custom_call.1} parent=43 // pred_check
          %p726 = pneg %p122
        $region46: #{tpu_custom_call.1} parent=43 // pred_check_branch
          %728 = sbr.rel (%p726) target = $region48
        $region47: #{tpu_custom_call.1} parent=43 // pred_region
          %s729 = sand.u32 %s107, 1
          %s730 = scalar_lea.sflag [#allocation4], %s729
          %s731 = sand.u32 %s107, 1
          %s732 = smul.addr %s731, 16
          %s733 = scalar_lea.vmem [#allocation5], %s732
          %734 = dma.done %s730, 256
        $region48: #{tpu_custom_call.1} parent=43 // pred_fallthru
          _
      $region44: #{tpu_custom_call.1} parent=5 // pred_fallthru
        _
    $region6: #{tpu_custom_call.1} parent=1 // loop_footer
      %s19 = sadd.s32 1, %s15
    $region7: #{tpu_custom_call.1} parent=1 // loop_footer_branch
      %14 = sbr.rel target = $region3
    $region8: #{tpu_custom_call.1} parent=1 // loop_exit
      _
    %735 = vsyncpa [#allocation3], 1
    %s736 = scalar_lea.sflag [#allocation3], 1
    %737 = vsyncpa %s736, 1
    %738 = vsyncpa [#allocation4], 1
    %s739 = scalar_lea.sflag [#allocation4], 1
    %740 = vsyncpa %s739, 1

</llo_original>
